<compile_context>
chip_gen: v5e
topology: v5e:2x2
jax: 0.10.0
libtpu: 0.0.40
codegen_flags: <defaults>
</compile_context>

<pallas_src>
import functools

import jax
import jax.numpy as jnp
from jax.experimental import pallas as pl
from jax.experimental.pallas import tpu as pltpu

LANE = 128
SUBLANE = 8
CHUNK = SUBLANE * LANE  # 1024 elements


def _device_kind():
    try:
        return jax.devices()[0].device_kind.lower()
    except Exception:  # pragma: no cover - defensive
        return ""


def _default_tile_rows(kind):
    # 2-4 MiB per f32 input buffer: big enough to amortize per-step overhead,
    # small enough that 2 inputs x 2 pipeline buffers fit comfortably in the
    # scoped VMEM limit we request below.
    if "v5" in kind:
        return 4096          # 2 MiB/buffer, 8 MiB double-buffered on v5e
    return 8192              # 4 MiB/buffer, 16 MiB double-buffered (v6e/v7x)


def _num_core_splits(kind):
    # v7x has 2 TensorCores per chip -> shard the streaming reduction.
    return 2 if "v7" in kind else 1


def _dice_partials_kernel(x_ref, t_ref, out_ref, *, rows, tile_rows,
                          blocks_per_split, exact):
    """Accumulate dice partial sums for one (tile_rows, 128) block.

    out_ref has kernel-view shape (2, 8, 128) f32 and stays resident in VMEM
    across the inner (reduction) grid axis:
      out_ref[0] : partials of sum(sigmoid(x) * t)       (intersection)
      out_ref[1] : partials of sum(sigmoid(x)) + sum(t)
    """
    c = pl.program_id(0)
    i = pl.program_id(1)

    @pl.when(i == 0)
    def _():
        out_ref[...] = jnp.zeros(out_ref.shape, jnp.float32)

    xf = x_ref[...].astype(jnp.float32)
    tf = t_ref[...].astype(jnp.float32)
    # Explicit EUP lowering of sigmoid: exp and approx reciprocal both go to
    # the EUP slot, leaving the VALU slot for the streaming adds below.
    s = pl.reciprocal(1.0 + jnp.exp(-xf), approx=True)

    def fold(v):
        # (tile_rows, 128) -> (8, 128) via pure element-wise vreg adds (VPU).
        return v.reshape(-1, SUBLANE, LANE).sum(axis=0)

    def accumulate(si, ti):
        out_ref[0] += fold(si * ti)
        out_ref[1] += fold(si + ti)

    if exact:
        # Statically known: every block is fully in bounds -> no masking ops
        # anywhere in the kernel.
        accumulate(s, tf)
    else:
        # Only the (single) ragged / overhanging edge block pays for masking;
        # all steady-state blocks take the unmasked branch.  The guard is a
        # scalar compare, not per-element work.
        start_row = (c * blocks_per_split + i) * tile_rows
        full = start_row + tile_rows <= rows

        @pl.when(full)
        def _():
            accumulate(s, tf)

        @pl.when(jnp.logical_not(full))
        def _():
            row = jax.lax.broadcasted_iota(jnp.int32, (tile_rows, LANE), 0)
            valid = (start_row + row) < rows
            accumulate(jnp.where(valid, s, 0.0), jnp.where(valid, tf, 0.0))


def dice_loss(inputs, targets, smooth=1.0, tile_rows=None):
    """Equivalent of DiceLoss.forward(inputs, targets, smooth)."""
    assert inputs.shape == targets.shape
    n = int(inputs.size)
    x = inputs.reshape(-1)
    t = targets.reshape(-1)

    rows = (n // CHUNK) * SUBLANE      # row count handled by the kernel (mult. of 8)
    main = rows * LANE                 # elements handled by the kernel

    intersection = jnp.float32(0.0)
    st_sum = jnp.float32(0.0)          # sum(sigmoid(x)) + sum(t)

    if rows > 0:
        kind = _device_kind()
        if tile_rows is None:
            tile_rows = _default_tile_rows(kind)
        splits = _num_core_splits(kind)

        tr = min(tile_rows, rows)
        if tr < rows and tr % 32 != 0:
            # Sublane/packing-safe tile rows for f32/bf16/int8 inputs when the
            # block does not cover the whole array.
            tr = max(32, (tr // 32) * 32)

        nblocks = pl.cdiv(rows, tr)
        splits = max(1, min(splits, nblocks))
        blocks_per_split = pl.cdiv(nblocks, splits)
        exact = (splits * blocks_per_split * tr == rows)   # static
        clamp = splits * blocks_per_split > nblocks        # static

        if main == n:
            x2 = x.reshape(rows, LANE)
            t2 = t.reshape(rows, LANE)
        else:
            # TODO(synk): for ragged sizes XLA may materialize this prefix
            # slice; if profiling shows an extra HBM pass, feed the kernel the
            # unsliced flat array and fold the remainder into the masked edge
            # block instead.
            x2 = x[:main].reshape(rows, LANE)
            t2 = t[:main].reshape(rows, LANE)

        def in_map(c, i):
            gb = c * blocks_per_split + i
            if clamp:
                # Overhanging blocks (last core only) are clamped to the final
                # block; their contribution is zeroed by the masked branch.
                gb = jnp.minimum(gb, nblocks - 1)
            return (gb, 0)

        kernel = functools.partial(
            _dice_partials_kernel, rows=rows, tile_rows=tr,
            blocks_per_split=blocks_per_split, exact=exact)

        # 2 inputs x 2 pipeline buffers + slack for the output block/overheads.
        in_bytes = tr * LANE * (x2.dtype.itemsize + t2.dtype.itemsize)
        vmem_limit = int(min(max(2 * in_bytes + (2 << 20), 16 << 20), 100 << 20))

        leading_sem = pltpu.CORE_PARALLEL if splits > 1 else pltpu.ARBITRARY

        partials = pl.pallas_call(
            kernel,
            out_shape=jax.ShapeDtypeStruct((splits, 2, SUBLANE, LANE),
                                           jnp.float32),
            grid_spec=pltpu.PrefetchScalarGridSpec(
                num_scalar_prefetch=0,
                grid=(splits, blocks_per_split),
                in_specs=[
                    pl.BlockSpec((tr, LANE), in_map),
                    pl.BlockSpec((tr, LANE), in_map),
                ],
                out_specs=pl.BlockSpec((None, 2, SUBLANE, LANE),
                                       lambda c, i: (c, 0, 0, 0)),
            ),
            compiler_params=pltpu.CompilerParams(
                dimension_semantics=(leading_sem, pltpu.ARBITRARY),
                vmem_limit_bytes=vmem_limit),
        )(x2, t2)

        intersection = jnp.sum(partials[:, 0])
        st_sum = jnp.sum(partials[:, 1])

    if main < n:
        # Tiny (<1024-element) tail handled in plain JAX: avoids padded HBM
        # copies of the full inputs.
        xt = jax.nn.sigmoid(x[main:].astype(jnp.float32))
        tt = t[main:].astype(jnp.float32)
        intersection = intersection + jnp.sum(xt * tt)
        st_sum = st_sum + jnp.sum(xt) + jnp.sum(tt)

    dice = (2.0 * intersection + smooth) / (st_sum + smooth)
    return 1.0 - dice


def _reference_dice_loss(inputs, targets, smooth=1.0):
    s = jax.nn.sigmoid(inputs.astype(jnp.float32)).reshape(-1)
    t = targets.astype(jnp.float32).reshape(-1)
    inter = jnp.sum(s * t)
    dice = (2.0 * inter + smooth) / (jnp.sum(s) + jnp.sum(t) + smooth)
    return 1.0 - dice


if __name__ == "__main__":
    key = jax.random.PRNGKey(0)
    k1, k2 = jax.random.split(key)
    # NCHW-shaped logits and binary targets.
    x = jax.random.normal(k1, (2, 4, 16, 16), dtype=jnp.float32)
    tgt = (jax.random.uniform(k2, (2, 4, 16, 16)) > 0.5).astype(jnp.float32)

    loss = dice_loss(x, tgt, smooth=1.0)
    loss = jax.block_until_ready(loss)

    ref = _reference_dice_loss(x, tgt, smooth=1.0)
    # Tolerance loosened slightly because the kernel uses the EUP approximate
    # reciprocal (pl.reciprocal(..., approx=True)) inside the sigmoid; the
    # residual error on the scalar loss is far below 5e-3.
    assert jnp.allclose(loss, ref, rtol=5e-3, atol=5e-3), (loss, ref)

    print("KERNEL_OK")
</pallas_src>

<mosaic_0001>
module attributes {stable_mosaic.version = 11 : i64} {
  func.func @_dice_partials_kernel(%arg0: i32, %arg1: i32, %arg2: memref<16x128xf32, #tpu.memory_space<vmem>>, %arg3: memref<16x128xf32, #tpu.memory_space<vmem>>, %arg4: memref<1x2x8x128xf32, #tpu.memory_space<vmem>>) attributes {dimension_semantics = [#tpu.dimension_semantics<arbitrary>, #tpu.dimension_semantics<arbitrary>], iteration_bounds = array<i64: 1, 1>, scalar_prefetch = 0 : i64, scratch_operands = 0 : i64, tpu.core_type = #tpu.core_type<tc>, window_params = [{transform_indices = @transform_0, window_bounds = array<i64: 16, 128>}, {transform_indices = @transform_1, window_bounds = array<i64: 16, 128>}, {transform_indices = @transform_2, window_bounds = array<i64: 1, 2, 8, 128>}]} {
    %c0_i32 = arith.constant 0 : i32
    %0 = arith.cmpi eq, %arg1, %c0_i32 : i32
    %1 = arith.extui %0 : i1 to i32
    %c0_i32_0 = arith.constant 0 : i32
    %2 = arith.cmpi ne, %1, %c0_i32_0 : i32
    scf.if %2 {
      %cst_22 = arith.constant 0.000000e+00 : f32
      %29 = vector.broadcast %cst_22 : f32 to vector<2x8x128xf32>
      %c0_23 = arith.constant 0 : index
      %c0_24 = arith.constant 0 : index
      %c0_25 = arith.constant 0 : index
      %c0_26 = arith.constant 0 : index
      %30 = vector.load %arg4[%c0_23, %c0_24, %c0_25, %c0_26] : memref<1x2x8x128xf32, #tpu.memory_space<vmem>>, vector<1x2x8x128xf32>
      %31 = vector.shape_cast %30 : vector<1x2x8x128xf32> to vector<2x8x128xf32>
      %32 = vector.shape_cast %29 : vector<2x8x128xf32> to vector<1x2x8x128xf32>
      tpu.vector_store %arg4[%c0_23, %c0_24, %c0_25, %c0_26], %32 {strides = array<i32>} : memref<1x2x8x128xf32, #tpu.memory_space<vmem>>, vector<1x2x8x128xf32>,
    } else {
    }
    %c0 = arith.constant 0 : index
    %c0_1 = arith.constant 0 : index
    %3 = vector.load %arg2[%c0, %c0_1] : memref<16x128xf32, #tpu.memory_space<vmem>>, vector<16x128xf32>
    %c0_2 = arith.constant 0 : index
    %c0_3 = arith.constant 0 : index
    %4 = vector.load %arg3[%c0_2, %c0_3] : memref<16x128xf32, #tpu.memory_space<vmem>>, vector<16x128xf32>
    %cst = arith.constant 0.000000e+00 : f32
    %5 = vector.broadcast %cst : f32 to vector<16x128xf32>
    %6 = arith.subf %5, %3 : vector<16x128xf32>
    %7 = math.exp %6 : vector<16x128xf32>
    %cst_4 = arith.constant 1.000000e+00 : f32
    %8 = vector.broadcast %cst_4 : f32 to vector<16x128xf32>
    %9 = arith.addf %8, %7 : vector<16x128xf32>
    %10 = tpu.reciprocal %9 {approx = true} : vector<16x128xf32> -> vector<16x128xf32>
    %c0_5 = arith.constant 0 : index
    %c0_6 = arith.constant 0 : index
    %c0_7 = arith.constant 0 : index
    %c0_8 = arith.constant 0 : index
    %11 = vector.load %arg4[%c0_5, %c0_6, %c0_7, %c0_8] : memref<1x2x8x128xf32, #tpu.memory_space<vmem>>, vector<1x1x8x128xf32>
    %12 = vector.shape_cast %11 : vector<1x1x8x128xf32> to vector<8x128xf32>
    %13 = arith.mulf %10, %4 : vector<16x128xf32>
    %14 = vector.shape_cast %13 : vector<16x128xf32> to vector<2x8x128xf32>
    %cst_9 = arith.constant dense<0.000000e+00> : vector<8x128xf32>
    %15 = vector.multi_reduction <add>, %14, %cst_9 [0] : vector<2x8x128xf32> to vector<8x128xf32>
    %16 = arith.addf %12, %15 : vector<8x128xf32>
    %c0_10 = arith.constant 0 : index
    %c0_11 = arith.constant 0 : index
    %c0_12 = arith.constant 0 : index
    %c0_13 = arith.constant 0 : index
    %17 = vector.load %arg4[%c0_10, %c0_11, %c0_12, %c0_13] : memref<1x2x8x128xf32, #tpu.memory_space<vmem>>, vector<1x1x8x128xf32>
    %18 = vector.shape_cast %17 : vector<1x1x8x128xf32> to vector<8x128xf32>
    %19 = vector.shape_cast %16 : vector<8x128xf32> to vector<1x1x8x128xf32>
    tpu.vector_store %arg4[%c0_10, %c0_11, %c0_12, %c0_13], %19 {strides = array<i32>} : memref<1x2x8x128xf32, #tpu.memory_space<vmem>>, vector<1x1x8x128xf32>,
    %c0_14 = arith.constant 0 : index
    %c1 = arith.constant 1 : index
    %c0_15 = arith.constant 0 : index
    %c0_16 = arith.constant 0 : index
    %20 = vector.load %arg4[%c0_14, %c1, %c0_15, %c0_16] : memref<1x2x8x128xf32, #tpu.memory_space<vmem>>, vector<1x1x8x128xf32>
    %21 = vector.shape_cast %20 : vector<1x1x8x128xf32> to vector<8x128xf32>
    %22 = arith.addf %10, %4 : vector<16x128xf32>
    %23 = vector.shape_cast %22 : vector<16x128xf32> to vector<2x8x128xf32>
    %cst_17 = arith.constant dense<0.000000e+00> : vector<8x128xf32>
    %24 = vector.multi_reduction <add>, %23, %cst_17 [0] : vector<2x8x128xf32> to vector<8x128xf32>
    %25 = arith.addf %21, %24 : vector<8x128xf32>
    %c0_18 = arith.constant 0 : index
    %c1_19 = arith.constant 1 : index
    %c0_20 = arith.constant 0 : index
    %c0_21 = arith.constant 0 : index
    %26 = vector.load %arg4[%c0_18, %c1_19, %c0_20, %c0_21] : memref<1x2x8x128xf32, #tpu.memory_space<vmem>>, vector<1x1x8x128xf32>
    %27 = vector.shape_cast %26 : vector<1x1x8x128xf32> to vector<8x128xf32>
    %28 = vector.shape_cast %25 : vector<8x128xf32> to vector<1x1x8x128xf32>
    tpu.vector_store %arg4[%c0_18, %c1_19, %c0_20, %c0_21], %28 {strides = array<i32>} : memref<1x2x8x128xf32, #tpu.memory_space<vmem>>, vector<1x1x8x128xf32>,
    return
  }
  func.func @transform_0(%arg0: i32, %arg1: i32) -> (i32, i32) {
    %c1_i32 = arith.constant 1 : i32
    %0 = arith.muli %arg0, %c1_i32 : i32
    %1 = arith.addi %0, %arg1 : i32
    %c0_i32 = arith.constant 0 : i32
    %c0_i32_0 = arith.constant 0 : i32
    return %1, %c0_i32 : i32, i32
  }
  func.func @transform_1(%arg0: i32, %arg1: i32) -> (i32, i32) {
    %c1_i32 = arith.constant 1 : i32
    %0 = arith.muli %arg0, %c1_i32 : i32
    %1 = arith.addi %0, %arg1 : i32
    %c0_i32 = arith.constant 0 : i32
    %c0_i32_0 = arith.constant 0 : i32
    return %1, %c0_i32 : i32, i32
  }
  func.func @transform_2(%arg0: i32, %arg1: i32) -> (i32, i32, i32, i32) {
    %c0_i32 = arith.constant 0 : i32
    %c0_i32_0 = arith.constant 0 : i32
    %c0_i32_1 = arith.constant 0 : i32
    %c0_i32_2 = arith.constant 0 : i32
    return %arg0, %c0_i32, %c0_i32_0, %c0_i32_1 : i32, i32, i32, i32
  }
}

</mosaic_0001>

<llo_original>
// kernel: tpu_custom_call.1
$region0: #{tpu_custom_call.1}
  #allocation0 [shape = 'u32[]', space=smem, size = 0x4, offset = 0x4, fixed_abs, tag = 'smem constant byte address 0x4 - core index']
  #allocation1 [shape = 'u32[72,128]{1,0:T(1,128)}', space=vmem, size = 0x9000, scoped, tag = 'internal scratch']
  %s0 = inlined_call_operand.hbm [shape: f32[16,128], index: 0, kind: input, shape index: {}]
  %s1 = inlined_call_operand.hbm [shape: f32[16,128], index: 1, kind: input, shape index: {}]
  %s2 = inlined_call_operand.hbm [shape: f32[1,2,8,128], index: 2, kind: output, shape index: {}]
  %s3 = sld [smem:[#allocation0]]
  $region30: #{tpu_custom_call.1} parent=0
    _
  %s5 = ssub.s32 1, %s3
  %s6 = scalar_select 0, %s5, %s3
  $region1: #{tpu_custom_call.1} parent=0
    #allocation2 [shape = 'u8[8192]{0}', space=vmem, size = 0x2000, scoped, tag = 'input window, operand 0, single buffered']
    #allocation3 [shape = 's32[1]{0}', space=sflag, size = 0x4, scoped, tag = 'scoped memory for tpu_custom_call.1']
    #allocation4 [shape = 's32[1]{0}', space=sflag, size = 0x4, scoped, tag = 'scoped memory for tpu_custom_call.1']
    #allocation5 [shape = 'u8[8192]{0}', space=vmem, size = 0x2000, scoped, tag = 'input window, operand 1, single buffered']
    #allocation6 [shape = 's32[1]{0}', space=sflag, size = 0x4, scoped, tag = 'scoped memory for tpu_custom_call.1']
    #allocation7 [shape = 'u8[8192]{0}', space=vmem, size = 0x2000, scoped, tag = 'output window, operand 0, single buffered']
    %7 = vsyncpa [#allocation3], 0
    %8 = vsyncpa [#allocation6], 0
    %9 = vsyncpa [#allocation4], 0
    // Predicated region
    $region2: #{tpu_custom_call.1} parent=1 // pred_check
      _
    $region3: #{tpu_custom_call.1} parent=1 // pred_check_branch
      %11 = sbr.rel (0) target = $region5
    $region4: #{tpu_custom_call.1} parent=1 // pred_region
      %s12 = sadd.s32 0, 0
      %s13 = smul.u32 2, %s12
      %15 = vsyncadd [#allocation3], 0
      %s16 = smul.addr %s13, 8
      %s17 = scalar_lea.hbm %s0, %s16
      %s18 = sshll.u32 %s17, 4
      %s19 = int_to_ptr.hbm [resolvable:$true] %s18
      %s20 = sshll.u32 [#allocation2], 4
      %s21 = int_to_ptr.vmem [resolvable:$true] %s20
      %26 = dma.hbm_to_vmem [thread:$0]  %s19, 256, %s21, [#allocation3], 128, 128, 8
    $region5: #{tpu_custom_call.1} parent=1 // pred_fallthru
      _
    // Predicated region
    $region6: #{tpu_custom_call.1} parent=1 // pred_check
      _
    $region7: #{tpu_custom_call.1} parent=1 // pred_check_branch
      %28 = sbr.rel (0) target = $region9
    $region8: #{tpu_custom_call.1} parent=1 // pred_region
      %s29 = sadd.s32 0, 0
      %s30 = smul.u32 2, %s29
      %32 = vsyncadd [#allocation6], 0
      %s33 = smul.addr %s30, 8
      %s34 = scalar_lea.hbm %s1, %s33
      %s35 = sshll.u32 %s34, 4
      %s36 = int_to_ptr.hbm [resolvable:$true] %s35
      %s37 = sshll.u32 [#allocation5], 4
      %s38 = int_to_ptr.vmem [resolvable:$true] %s37
      %43 = dma.hbm_to_vmem [thread:$0]  %s36, 256, %s38, [#allocation6], 128, 128, 8
    $region9: #{tpu_custom_call.1} parent=1 // pred_fallthru
      _
    // Predicated region
    $region10: #{tpu_custom_call.1} parent=1 // pred_check
      _
    $region11: #{tpu_custom_call.1} parent=1 // pred_check_branch
      %45 = sbr.rel (0) target = $region13
    $region12: #{tpu_custom_call.1} parent=1 // pred_region
      %47 = dma.done [#allocation3], 256
    $region13: #{tpu_custom_call.1} parent=1 // pred_fallthru
      _
    // Predicated region
    $region14: #{tpu_custom_call.1} parent=1 // pred_check
      _
    $region15: #{tpu_custom_call.1} parent=1 // pred_check_branch
      %49 = sbr.rel (0) target = $region17
    $region16: #{tpu_custom_call.1} parent=1 // pred_region
      %51 = dma.done [#allocation6], 256
    $region17: #{tpu_custom_call.1} parent=1 // pred_fallthru
      _
    %s52 = sadd.s32 0, 0
    %s53 = smul.u32 2, %s52
    %s54 = sadd.s32 0, 0
    %s55 = smul.u32 2, %s54
    %p56 = scmp.eq.s32.totalorder 0, 0
    // Predicated region
    $region18: #{tpu_custom_call.1} parent=1 // pred_check
      %p57 = pneg %p56
    $region19: #{tpu_custom_call.1} parent=1 // pred_check_branch
      %59 = sbr.rel (%p57) target = $region21
    $region20: #{tpu_custom_call.1} parent=1 // pred_region
      %60 = vst [vmem:[#allocation7] sm:$0xff] 0.0
      %61 = vst [vmem:[#allocation7 + $0x8] sm:$0xff] 0.0
    $region21: #{tpu_custom_call.1} parent=1 // pred_fallthru
      _
    %v62 = vld [vmem:[#allocation2] sm:$0xff]
    %v63 = vld [vmem:[#allocation2 + $0x8] sm:$0xff]
    %v64 = vld [vmem:[#allocation5] sm:$0xff]
    %v65 = vld [vmem:[#allocation5 + $0x8] sm:$0xff]
    %v66 = vsub.f32 0.0, %v62
    %v67 = vsub.f32 0.0, %v63
    %v68 = vmul.f32 %v66, 1.442695
    %v69 = vpow.pop %v68
    %v70 = vmul.f32 %v67, 1.442695
    %v71 = vpow.pop %v70
    %v72 = vadd.f32 %v69, 1.0
    %v73 = vadd.f32 %v71, 1.0
    %v74 = vrcp.pop %v72
    %v75 = vrcp.pop %v73
    %v76 = vld [vmem:[#allocation7] sm:$0xff]
    %v77 = vmul.f32 %v74, %v64
    %v78 = vmul.f32 %v75, %v65
    %v79 = vadd.f32 %v77, %v78
    %v80 = vadd.f32 %v76, %v79
    %81 = vst [vmem:[#allocation7] sm:$0xff] %v80
    %s82 = scalar_lea.vmem [#allocation7], 8
    %v83 = vld [vmem:[%s82] sm:$0xff]
    %v84 = vadd.f32 %v74, %v64
    %v85 = vadd.f32 %v75, %v65
    %v86 = vadd.f32 %v84, %v85
    %v87 = vadd.f32 %v83, %v86
    %88 = vst [vmem:[%s82] sm:$0xff] %v87
    // Predicated region
    $region22: #{tpu_custom_call.1} parent=1 // pred_check
      _
    $region23: #{tpu_custom_call.1} parent=1 // pred_check_branch
      %90 = sbr.rel (0) target = $region25
    $region24: #{tpu_custom_call.1} parent=1 // pred_region
      %92 = vsyncadd [#allocation4], 0
      %s93 = sshll.u32 [#allocation7], 4
      %s94 = int_to_ptr.vmem [resolvable:$true] %s93
      %s95 = sshll.u32 %s2, 4
      %s96 = int_to_ptr.hbm [resolvable:$true] %s95
      %101 = dma.vmem_to_hbm [thread:$0]  %s94, 256, %s96, [#allocation4], 128, 128, 8
    $region25: #{tpu_custom_call.1} parent=1 // pred_fallthru
      _
    // Predicated region
    $region26: #{tpu_custom_call.1} parent=1 // pred_check
      _
    $region27: #{tpu_custom_call.1} parent=1 // pred_check_branch
      %103 = sbr.rel (0) target = $region29
    $region28: #{tpu_custom_call.1} parent=1 // pred_region
      %105 = dma.done [#allocation4], 256
    $region29: #{tpu_custom_call.1} parent=1 // pred_fallthru
      _
    %106 = vsyncpa [#allocation3], 1
    %107 = vsyncpa [#allocation6], 1
    %108 = vsyncpa [#allocation4], 1

</llo_original>
